<compile_context>
chip_gen: v6e
topology: v6e:2x2x1
jax: 0.10.0
libtpu: 0.0.40
codegen_flags: <defaults>
</compile_context>

<pallas_src>
import functools

import jax
import jax.numpy as jnp
from jax import lax
from jax.experimental import pallas as pl
from jax.experimental.pallas import tpu as pltpu

LANE = 128                     # channel dims padded to a multiple of this (lane-dense)


def autopad(k, p=None):
    if p is None:
        p = k // 2 if isinstance(k, int) else [x // 2 for x in k]
    return p


def _cpad(c):
    return ((c + LANE - 1) // LANE) * LANE


def _round_up(v, m):
    return ((v + m - 1) // m) * m


def _sublane(dtype):
    # bf16 packs two rows per sublane -> align second-minor offsets to 16.
    return 16 if dtype == jnp.bfloat16 else 8


def _pick_tile_h(H, W, target_rows=512):
    """Smallest divisor of H with TH*W >= target_rows (else H). Always divides H."""
    for d in range(1, H + 1):
        if H % d == 0 and d * W >= target_rows:
            return d
    return H


@functools.lru_cache(maxsize=None)
def _vmem_limit_bytes():
    """Per-generation VMEM budget: ~3/4 of physical, capped at 100 MiB.
    (v5e/v6e -> 96 MiB, v7x -> 48 MiB). Falls back to 48 MiB if the query fails."""
    cap = 64 * 1024 * 1024
    try:
        cap = int(pltpu.get_tpu_info().vmem_capacity_bytes)
    except Exception:
        pass
    return min((cap * 3) // 4, 100 * 1024 * 1024)


# ---------------------------------------------------------------------------
# Kernels
# ---------------------------------------------------------------------------

def _conv1x1_kernel(*refs):
    """Pointwise conv + folded-BN shift + SiLU (optionally fusing a channel concat).

    refs = (x_ref_0, ..., x_ref_{m-1}, w_ref, shift_ref, o_ref)
      x_ref_i  : (1, TH, W, C1p_i)   channel-padded NHWC branch i
      w_ref    : (sum_i C1p_i, C2p)  BN-scale-folded weight matrix
      shift_ref: (1, C2p)            folded BN shift (f32)
      o_ref    : (1, TH, W, C2p)     lane-dense output block
    """
    *x_refs, w_ref, shift_ref, o_ref = refs
    th, w, c2 = o_ref.shape[1], o_ref.shape[2], o_ref.shape[3]
    acc = None
    off = 0
    for x_ref in x_refs:
        c1 = x_ref.shape[3]
        rows = x_ref[...].reshape(th * w, c1)
        d = jnp.dot(rows, w_ref[off:off + c1, :],
                    preferred_element_type=jnp.float32)
        acc = d if acc is None else acc + d           # first dot initializes acc
        off += c1
    y = acc + shift_ref[...]
    y = y * jax.nn.sigmoid(y)                          # SiLU
    o_ref[...] = y.reshape(1, th, w, c2).astype(o_ref.dtype)


def _convkxk_kernel(x_ref, w_ref, shift_ref, o_ref, xpad_ref, *, K, TH, A):
    """KxK stride-1 'same' conv + folded-BN shift + SiLU on a TH-row output tile.

    x_ref   : (1, H, W, C1)  full feature map (block index constant across the h axis)
    o_ref   : (1, TH, W, C2) row tile (h = pl.program_id(1))
    xpad_ref: (TH+2P, A+W+P, C1) halo'd slab in compute dtype
    """
    H, W, C1 = x_ref.shape[1], x_ref.shape[2], x_ref.shape[3]
    C2 = o_ref.shape[3]
    P = K // 2
    h = pl.program_id(1)
    n_h = pl.num_programs(1)
    row0 = h * TH

    zrow = jnp.zeros((P, W, C1), xpad_ref.dtype)
    zcol = jnp.zeros((TH + 2 * P, P, C1), xpad_ref.dtype)

    # Zero ONLY the halo border; the interior is fully overwritten below.
    xpad_ref[:, A - P:A, :] = zcol                         # left halo columns
    xpad_ref[:, A + W:A + W + P, :] = zcol                 # right halo columns
    xpad_ref[0:P, A:A + W, :] = zrow                       # top halo rows (image border)
    xpad_ref[P + TH:P + TH + P, A:A + W, :] = zrow         # bottom halo rows

    # Interior rows of this tile.
    xpad_ref[P:P + TH, A:A + W, :] = (
        x_ref[:, pl.ds(row0, TH), :, :].reshape(TH, W, C1).astype(xpad_ref.dtype))

    # Halo rows from neighbouring tiles (stay zero at the image border).
    @pl.when(h > 0)
    def _():
        xpad_ref[0:P, A:A + W, :] = (
            x_ref[:, pl.ds(row0 - P, P), :, :].reshape(P, W, C1).astype(xpad_ref.dtype))

    @pl.when(h < n_h - 1)
    def _():
        xpad_ref[P + TH:P + TH + P, A:A + W, :] = (
            x_ref[:, pl.ds(row0 + TH, P), :, :].reshape(P, W, C1).astype(xpad_ref.dtype))

    # K*K accumulating MXU dots straight from the halo'd slab: no materialized
    # im2col patch (no 9x VMEM duplication, no copy phase before the MXU fires).
    # TODO(synk): kw-offset taps are sublane-misaligned loads; a (W-major) layout
    # or pltpu.roll would make them free pointer offsets.
    acc = None
    for kh in range(K):
        for kw in range(K):
            tap = xpad_ref[kh:kh + TH, A - P + kw:A - P + kw + W, :].reshape(TH * W, C1)
            idx = kh * K + kw
            d = jnp.dot(tap, w_ref[idx * C1:(idx + 1) * C1, :],
                        preferred_element_type=jnp.float32)
            acc = d if acc is None else acc + d
    y = acc + shift_ref[...]
    y = y * jax.nn.sigmoid(y)
    o_ref[...] = y.reshape(1, TH, W, C2).astype(o_ref.dtype)


def _spp_cv5_kernel(x_ref, w_ref, shift_ref, o_ref, rowbuf_ref, colbuf_ref, *,
                    stage_ks, pmax, a_col):
    """Cascaded SPP max-pools fused with the cv5 1x1 conv (+BN shift, SiLU).

    x_ref   : (1, H, W, C)  x1 feature map (channel-padded)
    w_ref   : ((1+len(stage_ks))*C, C2)  cv5 weight, branch-blocked rows
    o_ref   : (1, H, W, C2)
    rowbuf  : (H+2*pmax, W, C)       row-pass buffer with -inf halos
    colbuf  : (H, a_col+pmax+W, C)   col-pass buffer with -inf halos
    Pooled maps never leave VMEM: each branch is contracted into the cv5 dot.
    """
    H, W, C = x_ref.shape[1], x_ref.shape[2], x_ref.shape[3]
    C2 = o_ref.shape[3]

    # -inf halos are written once; the stages only overwrite the interior.
    rowbuf_ref[0:pmax, :, :] = jnp.full((pmax, W, C), -jnp.inf, rowbuf_ref.dtype)
    rowbuf_ref[pmax + H:pmax + H + pmax, :, :] = jnp.full(
        (pmax, W, C), -jnp.inf, rowbuf_ref.dtype)
    colbuf_ref[:, a_col - pmax:a_col, :] = jnp.full(
        (H, pmax, C), -jnp.inf, colbuf_ref.dtype)
    colbuf_ref[:, a_col + W:a_col + W + pmax, :] = jnp.full(
        (H, pmax, C), -jnp.inf, colbuf_ref.dtype)

    cur = x_ref[0]                                   # branch 0: x1 itself
    acc = jnp.dot(cur.reshape(H * W, C), w_ref[0:C, :],
                  preferred_element_type=jnp.float32)

    for s, kp in enumerate(stage_ks):                # cascade: 5 -> 9 -> 13 windows
        p = kp // 2
        # Row pass (sliding along the untiled leading dim -> free pointer offsets).
        rowbuf_ref[pmax:pmax + H, :, :] = cur.astype(rowbuf_ref.dtype)
        m = rowbuf_ref[pmax - p:pmax - p + H, :, :]
        for d in range(1, kp):
            m = jnp.maximum(m, rowbuf_ref[pmax - p + d:pmax - p + d + H, :, :])
        # Column pass.
        colbuf_ref[:, a_col:a_col + W, :] = m
        out = colbuf_ref[:, a_col - p:a_col - p + W, :]
        for d in range(1, kp):
            out = jnp.maximum(out, colbuf_ref[:, a_col - p + d:a_col - p + d + W, :])
        cur = out
        acc = acc + jnp.dot(cur.reshape(H * W, C),
                            w_ref[(s + 1) * C:(s + 2) * C, :],
                            preferred_element_type=jnp.float32)

    y = acc + shift_ref[...]
    y = y * jax.nn.sigmoid(y)
    o_ref[...] = y.reshape(1, H, W, C2).astype(o_ref.dtype)


# ---------------------------------------------------------------------------
# pallas_call wrappers
# ---------------------------------------------------------------------------

def conv1x1_bn_silu(xs, w_mat, shift):
    """1x1 Conv+BN+SiLU; `xs` is a list of channel-padded NHWC branches whose
    channel concatenation forms the conv input (the concat is fused here)."""
    xs = list(xs)
    N, H, W, _ = xs[0].shape
    C2p = w_mat.shape[1]
    TH = _pick_tile_h(H, W, target_rows=512)     # divisor of H, M = TH*W >= 512
    x_specs = [pl.BlockSpec((1, TH, W, x.shape[3]), lambda n, h: (n, h, 0, 0))
               for x in xs]
    return pl.pallas_call(
        _conv1x1_kernel,
        out_shape=jax.ShapeDtypeStruct((N, H, W, C2p), xs[0].dtype),
        grid_spec=pltpu.PrefetchScalarGridSpec(
            num_scalar_prefetch=0,
            grid=(N, H // TH),
            in_specs=x_specs + [
                pl.BlockSpec(w_mat.shape, lambda n, h: (0, 0)),
                pl.BlockSpec(shift.shape, lambda n, h: (0, 0)),
            ],
            out_specs=pl.BlockSpec((1, TH, W, C2p), lambda n, h: (n, h, 0, 0)),
        ),
        compiler_params=pltpu.CompilerParams(
            dimension_semantics=("parallel", "parallel"),
            vmem_limit_bytes=_vmem_limit_bytes()),
    )(*xs, w_mat, shift)


def convkxk_bn_silu(x, w_mat, shift, *, k):
    """KxK stride-1 'same' Conv+BN+SiLU (used for the 3x3 convs), row-tiled output."""
    N, H, W, C1p = x.shape
    C2p = w_mat.shape[1]
    P = k // 2
    A = _round_up(P, _sublane(x.dtype))
    TH = _pick_tile_h(H, W, target_rows=512)
    kernel = functools.partial(_convkxk_kernel, K=k, TH=TH, A=A)
    # TODO(synk): for very large feature maps, deliver only a halo'd (TH+2P)-row
    # input slab per step via manual make_async_copy instead of the full-H block.
    return pl.pallas_call(
        kernel,
        out_shape=jax.ShapeDtypeStruct((N, H, W, C2p), x.dtype),
        grid_spec=pltpu.PrefetchScalarGridSpec(
            num_scalar_prefetch=0,
            grid=(N, H // TH),
            in_specs=[
                pl.BlockSpec((1, H, W, C1p), lambda n, h: (n, 0, 0, 0)),
                pl.BlockSpec(w_mat.shape, lambda n, h: (0, 0)),
                pl.BlockSpec(shift.shape, lambda n, h: (0, 0)),
            ],
            out_specs=pl.BlockSpec((1, TH, W, C2p), lambda n, h: (n, h, 0, 0)),
            scratch_shapes=[
                pltpu.VMEM((TH + 2 * P, A + W + P, C1p), x.dtype),   # halo'd slab
            ],
        ),
        compiler_params=pltpu.CompilerParams(
            dimension_semantics=("parallel", "parallel"),
            vmem_limit_bytes=_vmem_limit_bytes()),
    )(x, w_mat, shift)


def _cascade_stages(pool_k):
    """Express pool_k as a cascade of stride-1 'same' max pools (5,9,13 -> 5,5,5)."""
    stages, prev = [], None
    for kp in pool_k:
        s = kp if prev is None else kp - prev + 1
        assert s >= 1 and s % 2 == 1, (
            f"pool_k={pool_k} cannot be expressed as a cascade of 'same' max pools")
        stages.append(s)
        prev = kp
    return tuple(stages)


def spp_cv5_bn_silu(x1, w_mat, shift, *, pool_k):
    """Fused (cascaded) SPP max-pools + cv5 1x1 Conv+BN+SiLU.

    Pooled feature maps are produced in VMEM scratch and contracted directly
    against the cv5 weight - no HBM write/read of the pooled maps."""
    N, H, W, Cp = x1.shape
    C2p = w_mat.shape[1]
    stage_ks = _cascade_stages(pool_k)
    assert w_mat.shape[0] == (1 + len(stage_ks)) * Cp
    pmax = max(stage_ks) // 2
    a_col = _round_up(pmax, _sublane(x1.dtype))
    kernel = functools.partial(_spp_cv5_kernel, stage_ks=stage_ks,
                               pmax=pmax, a_col=a_col)
    # TODO(synk): row-tile this kernel (with a 2*sum(P) halo) for v7x when N < 2.
    return pl.pallas_call(
        kernel,
        out_shape=jax.ShapeDtypeStruct((N, H, W, C2p), x1.dtype),
        grid_spec=pltpu.PrefetchScalarGridSpec(
            num_scalar_prefetch=0,
            grid=(N,),
            in_specs=[
                pl.BlockSpec((1, H, W, Cp), lambda n: (n, 0, 0, 0)),
                pl.BlockSpec(w_mat.shape, lambda n: (0, 0)),
                pl.BlockSpec(shift.shape, lambda n: (0, 0)),
            ],
            out_specs=pl.BlockSpec((1, H, W, C2p), lambda n: (n, 0, 0, 0)),
            scratch_shapes=[
                pltpu.VMEM((H + 2 * pmax, W, Cp), x1.dtype),            # row pass
                pltpu.VMEM((H, a_col + pmax + W, Cp), x1.dtype),        # col pass
            ],
        ),
        compiler_params=pltpu.CompilerParams(
            dimension_semantics=("parallel",),
            vmem_limit_bytes=_vmem_limit_bytes()),
    )(x1, w_mat, shift)


# ---------------------------------------------------------------------------
# Parameter folding (BN -> weights) and the SPPCSPC forward
# ---------------------------------------------------------------------------

def fold_bn_into_weight(w_oihw, gamma, beta, mean, var, in_blocks, *, dtype,
                        eps=1e-5):
    """Fold BN scale into the conv weight and lay it out as the lane-dense
    (K*K*sum(cpad(in_blocks)), cpad(C2)) matrix the kernels expect."""
    C2, C1, K, _ = w_oihw.shape
    assert sum(in_blocks) == C1
    scale = gamma / jnp.sqrt(var + eps)
    shift = beta - mean * scale
    w = w_oihw.astype(jnp.float32) * scale[:, None, None, None]   # fold BN scale
    w = jnp.transpose(w, (2, 3, 1, 0))                            # -> HWIO
    blocks, off = [], 0
    for b in in_blocks:
        blk = w[:, :, off:off + b, :]
        blocks.append(jnp.pad(blk, ((0, 0), (0, 0), (0, _cpad(b) - b), (0, 0))))
        off += b
    w = jnp.concatenate(blocks, axis=2)                           # (K,K,sum cpad,C2)
    C2p = _cpad(C2)
    w = jnp.pad(w, ((0, 0), (0, 0), (0, 0), (0, C2p - C2)))
    w = w.reshape(K * K * w.shape[2], C2p).astype(dtype)
    shift = jnp.pad(shift, (0, C2p - C2)).reshape(1, C2p).astype(jnp.float32)
    return w, shift


def sppcspc_forward(x_nchw, params, *, pool_k=(5, 9, 13),
                    compute_dtype=jnp.float32):
    """Pallas SPPCSPC forward.  Activations stay channel-padded NHWC for the whole
    block; NCHW <-> NHWC conversion and channel (un)padding happen only at the
    module boundary."""
    N, C1, H, W = x_nchw.shape
    c_ = params["cv1"][0].shape[0]
    c2 = params["cv7"][0].shape[0]

    def fold(name, in_blocks):
        wgt, g, b, m, v = params[name]
        return fold_bn_into_weight(wgt, g, b, m, v, in_blocks, dtype=compute_dtype)

    # Module boundary: ONE transpose + lane-dense channel pad for the whole block.
    x = jnp.transpose(x_nchw, (0, 2, 3, 1)).astype(compute_dtype)
    x = jnp.pad(x, ((0, 0), (0, 0), (0, 0), (0, _cpad(C1) - C1)))

    w1, s1 = fold("cv1", [C1])
    w2, s2 = fold("cv2", [C1])
    w3, s3 = fold("cv3", [c_])
    w4, s4 = fold("cv4", [c_])
    w5, s5 = fold("cv5", [c_] * (1 + len(pool_k)))
    w6, s6 = fold("cv6", [c_])
    w7, s7 = fold("cv7", [c_, c_])

    x1 = conv1x1_bn_silu([x], w1, s1)
    x1 = convkxk_bn_silu(x1, w3, s3, k=3)
    x1 = conv1x1_bn_silu([x1], w4, s4)
    # torch.cat([x1] + pools) + cv5 fused; pooled maps never written to HBM.
    y1 = spp_cv5_bn_silu(x1, w5, s5, pool_k=pool_k)
    y1 = convkxk_bn_silu(y1, w6, s6, k=3)
    y2 = conv1x1_bn_silu([x], w2, s2)
    # torch.cat((y1, y2)) fused into cv7.
    out = conv1x1_bn_silu([y1, y2], w7, s7)

    out = out[..., :c2]                                              # drop channel pad
    return jnp.transpose(out, (0, 3, 1, 2)).astype(jnp.float32)      # back to NCHW


# ---------------------------------------------------------------------------
# Pure-JAX reference (mirrors the PyTorch module)
# ---------------------------------------------------------------------------

def _conv_ref(x, w, gamma, beta, mean, var, eps=1e-5):
    k = w.shape[2]
    p = autopad(k)
    y = lax.conv_general_dilated(
        x.astype(jnp.float32), w.astype(jnp.float32), (1, 1),
        [(p, p), (p, p)], dimension_numbers=("NCHW", "OIHW", "NCHW"))
    scale = gamma / jnp.sqrt(var + eps)
    y = y * scale[None, :, None, None] + (beta - mean * scale)[None, :, None, None]
    return y * jax.nn.sigmoid(y)


def _maxpool_ref(x, kp):
    p = kp // 2
    return lax.reduce_window(x, -jnp.inf, lax.max, (1, 1, kp, kp),
                             (1, 1, 1, 1), [(0, 0), (0, 0), (p, p), (p, p)])


def sppcspc_ref(x, params, pool_k=(5, 9, 13)):
    cv = lambda name, t: _conv_ref(t, *params[name])
    x1 = cv("cv4", cv("cv3", cv("cv1", x)))
    cat1 = jnp.concatenate([x1] + [_maxpool_ref(x1, kp) for kp in pool_k], axis=1)
    y1 = cv("cv6", cv("cv5", cat1))
    y2 = cv("cv2", x)
    return cv("cv7", jnp.concatenate([y1, y2], axis=1))


# ---------------------------------------------------------------------------
# Self-test
# ---------------------------------------------------------------------------

if __name__ == "__main__":
    # SPPCSPC(c1=8, c2=8, e=0.5, k=(5, 9, 13))  ->  c_ = int(2 * c2 * e) = 8
    c1, c2, e = 8, 8, 0.5
    c_ = int(2 * c2 * e)
    N, H, W = 2, 16, 16
    pool_k = (5, 9, 13)

    key = jax.random.PRNGKey(0)

    def make_conv_params(k_, cout, cin, ksz):
        kw_, kg, kb, km, kv = jax.random.split(k_, 5)
        w = 0.1 * jax.random.normal(kw_, (cout, cin, ksz, ksz), jnp.float32)
        g = 1.0 + 0.1 * jax.random.normal(kg, (cout,), jnp.float32)
        b = 0.1 * jax.random.normal(kb, (cout,), jnp.float32)
        m = 0.1 * jax.random.normal(km, (cout,), jnp.float32)
        v = jnp.abs(jax.random.normal(kv, (cout,), jnp.float32)) + 0.5
        return (w, g, b, m, v)

    spec = {
        "cv1": (c_, c1, 1), "cv2": (c_, c1, 1), "cv3": (c_, c_, 3),
        "cv4": (c_, c_, 1), "cv5": (c_, 4 * c_, 1), "cv6": (c_, c_, 3),
        "cv7": (c2, 2 * c_, 1),
    }
    keys = jax.random.split(key, len(spec) + 1)
    params = {name: make_conv_params(keys[i], *shp)
              for i, (name, shp) in enumerate(spec.items())}
    x = jax.random.normal(keys[-1], (N, c1, H, W), jnp.float32)

    ref = sppcspc_ref(x, params, pool_k)

    # Exact path (f32 end-to-end).
    out_f32 = jax.block_until_ready(
        sppcspc_forward(x, params, pool_k=pool_k, compute_dtype=jnp.float32))
    assert out_f32.shape == (N, c2, H, W)
    err32 = float(jnp.max(jnp.abs(out_f32 - ref)))
    assert err32 < 2e-3, f"f32 path mismatch: {err32}"

    # bf16 MXU-operand path (v6e/v7x): bf16 weights/activations, f32 accumulation.
    out_bf16 = jax.block_until_ready(
        sppcspc_forward(x, params, pool_k=pool_k, compute_dtype=jnp.bfloat16))
    err16 = float(jnp.max(jnp.abs(out_bf16 - ref)))
    assert err16 < 1.5e-1, f"bf16 path mismatch: {err16}"

    print("KERNEL_OK")
</pallas_src>

<mosaic_0001>
module attributes {stable_mosaic.version = 11 : i64} {
  func.func @_conv1x1_kernel(%arg0: i32, %arg1: i32, %arg2: memref<1x16x16x128xf32, #tpu.memory_space<vmem>>, %arg3: memref<128x128xf32, #tpu.memory_space<vmem>>, %arg4: memref<1x128xf32, #tpu.memory_space<vmem>>, %arg5: memref<1x16x16x128xf32, #tpu.memory_space<vmem>>) attributes {dimension_semantics = [#tpu.dimension_semantics<parallel>, #tpu.dimension_semantics<parallel>], iteration_bounds = array<i64: 2, 1>, scalar_prefetch = 0 : i64, scratch_operands = 0 : i64, tpu.core_type = #tpu.core_type<tc>, window_params = [{transform_indices = @transform_0, window_bounds = array<i64: 1, 16, 16, 128>}, {pipeline_mode = #tpu.pipeline_mode<synchronous>, transform_indices = @transform_1, window_bounds = array<i64: 128, 128>}, {pipeline_mode = #tpu.pipeline_mode<synchronous>, transform_indices = @transform_2, window_bounds = array<i64: 1, 128>}, {transform_indices = @transform_3, window_bounds = array<i64: 1, 16, 16, 128>}]} {
    %c0 = arith.constant 0 : index
    %c0_0 = arith.constant 0 : index
    %c0_1 = arith.constant 0 : index
    %c0_2 = arith.constant 0 : index
    %0 = vector.load %arg2[%c0, %c0_0, %c0_1, %c0_2] : memref<1x16x16x128xf32, #tpu.memory_space<vmem>>, vector<1x16x16x128xf32>
    %1 = vector.shape_cast %0 : vector<1x16x16x128xf32> to vector<256x128xf32>
    %c0_3 = arith.constant 0 : index
    %c0_4 = arith.constant 0 : index
    %2 = vector.load %arg3[%c0_3, %c0_4] : memref<128x128xf32, #tpu.memory_space<vmem>>, vector<128x128xf32>
    %cst = arith.constant dense<0.000000e+00> : vector<256x128xf32>
    %3 = tpu.matmul %1, %2, %cst {dimension_numbers = #tpu.dot_dimension_numbers<[1], [0], [0], [1], [0, 0, 1, 1], [], []>} : vector<256x128xf32>, vector<128x128xf32>, vector<256x128xf32> -> vector<256x128xf32>
    %c0_5 = arith.constant 0 : index
    %c0_6 = arith.constant 0 : index
    %4 = vector.load %arg4[%c0_5, %c0_6] : memref<1x128xf32, #tpu.memory_space<vmem>>, vector<1x128xf32>
    %5 = vector.broadcast %4 : vector<1x128xf32> to vector<256x128xf32>
    %6 = arith.addf %3, %5 : vector<256x128xf32>
    %7 = arith.negf %6 : vector<256x128xf32>
    %8 = math.exp %7 : vector<256x128xf32>
    %cst_7 = arith.constant 1.000000e+00 : f32
    %9 = vector.broadcast %cst_7 : f32 to vector<256x128xf32>
    %10 = arith.addf %9, %8 : vector<256x128xf32>
    %11 = arith.divf %9, %10 : vector<256x128xf32>
    %12 = arith.mulf %6, %11 : vector<256x128xf32>
    %13 = vector.shape_cast %12 : vector<256x128xf32> to vector<1x16x16x128xf32>
    %c0_8 = arith.constant 0 : index
    %c0_9 = arith.constant 0 : index
    %c0_10 = arith.constant 0 : index
    %c0_11 = arith.constant 0 : index
    %14 = vector.load %arg5[%c0_8, %c0_9, %c0_10, %c0_11] : memref<1x16x16x128xf32, #tpu.memory_space<vmem>>, vector<1x16x16x128xf32>
    tpu.vector_store %arg5[%c0_8, %c0_9, %c0_10, %c0_11], %13 {strides = array<i32>} : memref<1x16x16x128xf32, #tpu.memory_space<vmem>>, vector<1x16x16x128xf32>,
    return
  }
  func.func @transform_0(%arg0: i32, %arg1: i32) -> (i32, i32, i32, i32) {
    %c0_i32 = arith.constant 0 : i32
    %c0_i32_0 = arith.constant 0 : i32
    %c0_i32_1 = arith.constant 0 : i32
    return %arg0, %arg1, %c0_i32, %c0_i32_0 : i32, i32, i32, i32
  }
  func.func @transform_1(%arg0: i32, %arg1: i32) -> (i32, i32) {
    %c0_i32 = arith.constant 0 : i32
    %c0_i32_0 = arith.constant 0 : i32
    %c0_i32_1 = arith.constant 0 : i32
    return %c0_i32, %c0_i32_0 : i32, i32
  }
  func.func @transform_2(%arg0: i32, %arg1: i32) -> (i32, i32) {
    %c0_i32 = arith.constant 0 : i32
    %c0_i32_0 = arith.constant 0 : i32
    %c0_i32_1 = arith.constant 0 : i32
    return %c0_i32, %c0_i32_0 : i32, i32
  }
  func.func @transform_3(%arg0: i32, %arg1: i32) -> (i32, i32, i32, i32) {
    %c0_i32 = arith.constant 0 : i32
    %c0_i32_0 = arith.constant 0 : i32
    %c0_i32_1 = arith.constant 0 : i32
    return %arg0, %arg1, %c0_i32, %c0_i32_0 : i32, i32, i32, i32
  }
}

</mosaic_0001>

<llo_original>
// kernel: tpu_custom_call.1
$region0: #{tpu_custom_call.1}
  #allocation0 [shape = 'u32[]', space=smem, size = 0x4, offset = 0x4, fixed_abs, tag = 'smem constant byte address 0x4 - core index']
  #allocation1 [shape = 'u32[144,128]{1,0:T(1,128)}', space=vmem, size = 0x12000, scoped, tag = 'internal scratch']
  %s0 = inlined_call_operand.hbm [shape: f32[2,16,16,128], index: 0, kind: input, shape index: {}]
  %s1 = inlined_call_operand.hbm [shape: f32[128,128], index: 1, kind: input, shape index: {}]
  %s2 = inlined_call_operand.vmem [shape: f32[1,128], index: 2, kind: input, shape index: {}]
  %s3 = inlined_call_operand.hbm [shape: f32[2,16,16,128], index: 3, kind: output, shape index: {}]
  %s4 = sld [smem:[#allocation0]]
  $region53: #{tpu_custom_call.1} parent=0
    _
  %s6 = ssub.s32 1, %s4
  %s7 = scalar_select 0, %s6, %s4
  $region1: #{tpu_custom_call.1} parent=0
    #allocation2 [shape = 'u8[262144]{0}', space=vmem, size = 0x40000, scoped, tag = 'input window, operand 0']
    #allocation3 [shape = 's32[2]{0}', space=sflag, size = 0x8, scoped, tag = 'scoped memory for tpu_custom_call.1']
    #allocation4 [shape = 's32[2]{0}', space=sflag, size = 0x8, scoped, tag = 'scoped memory for tpu_custom_call.1']
    #allocation5 [shape = 'u8[65536]{0}', space=vmem, size = 0x10000, scoped, tag = 'input window, operand 1, single buffered']
    #allocation6 [shape = 's32[1]{0}', space=sflag, size = 0x4, scoped, tag = 'scoped memory for tpu_custom_call.1']
    #allocation7 [shape = 'u8[262144]{0}', space=vmem, size = 0x40000, scoped, tag = 'output window, operand 0']
    %8 = vsyncpa [#allocation3], 0
    %s9 = scalar_lea.sflag [#allocation3], 1
    %10 = vsyncpa %s9, 0
    %11 = vsyncpa [#allocation6], 0
    %12 = vsyncpa [#allocation4], 0
    %s13 = scalar_lea.sflag [#allocation4], 1
    %14 = vsyncpa %s13, 0
    loop: start=0, step=1, limit=4
    $region2: #{tpu_custom_call.1} parent=1 // loop_pre_header
      _
    $region3: #{tpu_custom_call.1} parent=1 // loop_header
      %s16 = sphi 0, %s20
      %p17 = scmp.ge.s32.totalorder %s16, 4
      %s23 = sphi 0, %s35
      %s24 = sphi 0, %s31
      %s25 = sphi 0, %s23
      %s26 = sphi 0, %s24
      %s27 = sphi 0, %s25
      %s28 = sphi 0, %s26
      %s40 = sphi 0, %s42
      %s43 = sphi 0, %s40
      %s44 = sphi 0, %s43
      %s60 = sphi 0, %s44
      %s64 = sphi 0, %s64
      %s66 = sphi 0, %s64
      %s67 = sphi 0, %s66
      %s81 = sphi 0, %s67
      %s85 = sphi 0, %s85
      %s87 = sphi 0, %s85
      %s88 = sphi 0, %s87
      %s102 = sphi 0, %s88
      %s110 = sphi 0, %s112
      %s113 = sphi 0, %s110
      %s114 = sphi 0, %s113
      %s130 = sphi 0, %s114
    $region4: #{tpu_custom_call.1} parent=1 // loop_header_branch
      %19 = sbr.rel (%p17) target = $region8
    $region5: #{tpu_custom_call.1} parent=1 // loop_body
      %s21 = ssub.s32 %s16, 1
      %s22 = ssub.s32 %s16, 2
      %s29 = sadd.s32 1, %s24
      %p30 = scmp.ge.s32.totalorder %s29, 1
      %s31 = scalar_select %p30, 0, %s29
      %s32 = sadd.s32 1, %s23
      %s33 = scalar_select %p30, %s32, %s23
      %p34 = scmp.ge.s32.totalorder %s33, 2
      %s35 = scalar_select %p34, 0, %s33
      %s36 = ssub.s32 %s23, %s35
      %s37 = ssub.s32 %s24, %s31
      %s38 = sor.u32 %s36, %s37
      %p39 = scmp.eq.s32.totalorder %s38, 0
      %s41 = sadd.s32 %s40, 1
      %s42 = scalar_select %p39, %s40, %s41
      %p45 = pneg %p39
      %p46 = scmp.eq.s32.totalorder %s16, 1
      %p47 = por %p45, %p46
      %p48 = scmp.ne.s32.totalorder %s40, %s43
      %p49 = scmp.eq.s32.totalorder %s16, 0
      %p50 = por %p48, %p49
      %p51 = scmp.ne.s32.totalorder %s40, %s43
      %p52 = scmp.eq.s32.totalorder %s21, 1
      %p53 = por %p51, %p52
      %p54 = scmp.ne.s32.totalorder %s43, %s44
      %p55 = scmp.eq.s32.totalorder %s21, 0
      %p56 = por %p54, %p55
      %p57 = scmp.ne.s32.totalorder %s43, %s44
      %p58 = scmp.eq.s32.totalorder %s22, 1
      %p59 = por %p57, %p58
      %p61 = scmp.ne.s32.totalorder %s44, %s60
      %p62 = scmp.eq.s32.totalorder %s22, 0
      %p63 = por %p61, %p62
      %s65 = sadd.s32 %s64, 1
      %p68 = scmp.eq.s32.totalorder %s16, 1
      %p69 = scmp.ne.s32.totalorder %s64, %s66
      %p70 = scmp.eq.s32.totalorder %s16, 0
      %p71 = por %p69, %p70
      %p72 = scmp.ne.s32.totalorder %s64, %s66
      %p73 = scmp.eq.s32.totalorder %s21, 1
      %p74 = por %p72, %p73
      %p75 = scmp.ne.s32.totalorder %s66, %s67
      %p76 = scmp.eq.s32.totalorder %s21, 0
      %p77 = por %p75, %p76
      %p78 = scmp.ne.s32.totalorder %s66, %s67
      %p79 = scmp.eq.s32.totalorder %s22, 1
      %p80 = por %p78, %p79
      %p82 = scmp.ne.s32.totalorder %s67, %s81
      %p83 = scmp.eq.s32.totalorder %s22, 0
      %p84 = por %p82, %p83
      %s86 = sadd.s32 %s85, 1
      %p89 = scmp.eq.s32.totalorder %s16, 1
      %p90 = scmp.ne.s32.totalorder %s85, %s87
      %p91 = scmp.eq.s32.totalorder %s16, 0
      %p92 = por %p90, %p91
      %p93 = scmp.ne.s32.totalorder %s85, %s87
      %p94 = scmp.eq.s32.totalorder %s21, 1
      %p95 = por %p93, %p94
      %p96 = scmp.ne.s32.totalorder %s87, %s88
      %p97 = scmp.eq.s32.totalorder %s21, 0
      %p98 = por %p96, %p97
      %p99 = scmp.ne.s32.totalorder %s87, %s88
      %p100 = scmp.eq.s32.totalorder %s22, 1
      %p101 = por %p99, %p100
      %p103 = scmp.ne.s32.totalorder %s88, %s102
      %p104 = scmp.eq.s32.totalorder %s22, 0
      %p105 = por %p103, %p104
      %s106 = ssub.s32 %s23, %s35
      %s107 = ssub.s32 %s24, %s31
      %s108 = sor.u32 %s106, %s107
      %p109 = scmp.eq.s32.totalorder %s108, 0
      %s111 = sadd.s32 %s110, 1
      %s112 = scalar_select %p109, %s110, %s111
      %p115 = pneg %p109
      %p116 = scmp.eq.s32.totalorder %s16, 1
      %p117 = por %p115, %p116
      %p118 = scmp.ne.s32.totalorder %s110, %s113
      %p119 = scmp.eq.s32.totalorder %s16, 0
      %p120 = por %p118, %p119
      %p121 = scmp.ne.s32.totalorder %s110, %s113
      %p122 = scmp.eq.s32.totalorder %s21, 1
      %p123 = por %p121, %p122
      %p124 = scmp.ne.s32.totalorder %s113, %s114
      %p125 = scmp.eq.s32.totalorder %s21, 0
      %p126 = por %p124, %p125
      %p127 = scmp.ne.s32.totalorder %s113, %s114
      %p128 = scmp.eq.s32.totalorder %s22, 1
      %p129 = por %p127, %p128
      %p131 = scmp.ne.s32.totalorder %s114, %s130
      %p132 = scmp.eq.s32.totalorder %s22, 0
      %p133 = por %p131, %p132
      %p134 = scmp.le.s32.totalorder 1, %s16
      %p135 = scmp.lt.s32.totalorder %s16, 3
      %p136 = pnand %p134, %p135
      %p137 = pneg %p136
      // Predicated region
      $region9: #{tpu_custom_call.1} parent=5 // pred_check
        _
      $region10: #{tpu_custom_call.1} parent=5 // pred_check_branch
        %139 = sbr.rel (%p136) target = $region12
      $region11: #{tpu_custom_call.1} parent=5 // pred_region
        %s140 = ssub.s32 %s16, 1
        // Predicated region
        $region13: #{tpu_custom_call.1} parent=11 // pred_check
          %p141 = pneg %p77
        $region14: #{tpu_custom_call.1} parent=11 // pred_check_branch
          %143 = sbr.rel (%p141) target = $region16
        $region15: #{tpu_custom_call.1} parent=11 // pred_region
          %s145 = ssub.s32 2048, 2048
          %146 = vsyncadd [#allocation6], %s145
          %s147 = sshll.u32 [#allocation5], 4
          %s148 = int_to_ptr.vmem [resolvable:$true] %s147
          %153 = dma.hbm_to_vmem [thread:$0]  %s1, 2048, %s148, [#allocation6], 128, 128, 8
        $region16: #{tpu_custom_call.1} parent=11 // pred_fallthru
          _
        // Predicated region
        $region17: #{tpu_custom_call.1} parent=11 // pred_check
          %p154 = pneg %p98
        $region18: #{tpu_custom_call.1} parent=11 // pred_check_branch
          %156 = sbr.rel (%p154) target = $region20
        $region19: #{tpu_custom_call.1} parent=11 // pred_region
          _
        $region20: #{tpu_custom_call.1} parent=11 // pred_fallthru
          _
      $region12: #{tpu_custom_call.1} parent=5 // pred_fallthru
        _
      %p157 = scmp.lt.s32.totalorder %s16, 2
      // Predicated region
      $region21: #{tpu_custom_call.1} parent=5 // pred_check
        %p158 = pneg %p157
      $region22: #{tpu_custom_call.1} parent=5 // pred_check_branch
        %160 = sbr.rel (%p158) target = $region24
      $region23: #{tpu_custom_call.1} parent=5 // pred_region
        // Predicated region
        $region25: #{tpu_custom_call.1} parent=23 // pred_check
          %p161 = pneg %p50
        $region26: #{tpu_custom_call.1} parent=23 // pred_check_branch
          %163 = sbr.rel (%p161) target = $region28
        $region27: #{tpu_custom_call.1} parent=23 // pred_region
          %s164 = sand.u32 %s40, 1
          %s165 = scalar_lea.sflag [#allocation3], %s164
          %s166 = sand.u32 %s40, 1
          %s167 = smul.addr %s166, 256
          %s168 = scalar_lea.vmem [#allocation2], %s167
          %s169 = smul.u32 16, %s24
          %s171 = ssub.s32 4096, 4096
          %172 = vsyncadd %s165, %s171
          %s173 = smul.addr %s169, 2
          %s174 = smul.addr %s23, 32
          %s175 = sadd.s32 %s173, %s174
          %s176 = smul.addr %s175, 128
          %s177 = scalar_lea.hbm %s0, %s176
          %s178 = sshll.u32 %s168, 4
          %s179 = int_to_ptr.vmem [resolvable:$true] %s178
          %184 = dma.hbm_to_vmem [thread:$0]  %s177, 4096, %s179, %s165, 128, 128, 8
        $region28: #{tpu_custom_call.1} parent=23 // pred_fallthru
          _
      $region24: #{tpu_custom_call.1} parent=5 // pred_fallthru
        _
      %p185 = scmp.le.s32.totalorder 1, %s16
      %p186 = scmp.lt.s32.totalorder %s16, 3
      %p187 = pnand %p185, %p186
      %p188 = pneg %p187
      // Predicated region
      $region29: #{tpu_custom_call.1} parent=5 // pred_check
        _
      $region30: #{tpu_custom_call.1} parent=5 // pred_check_branch
        %190 = sbr.rel (%p187) target = $region32
      $region31: #{tpu_custom_call.1} parent=5 // pred_region
        %s191 = ssub.s32 %s16, 1
        %s192 = sand.u32 %s43, 1
        %s193 = scalar_lea.sflag [#allocation3], %s192
        %s194 = sand.u32 %s43, 1
        %s195 = smul.addr %s194, 256
        %s196 = scalar_lea.vmem [#allocation2], %s195
        // Predicated region
        $region33: #{tpu_custom_call.1} parent=31 // pred_check
          %p197 = pneg %p56
        $region34: #{tpu_custom_call.1} parent=31 // pred_check_branch
          %199 = sbr.rel (%p197) target = $region36
        $region35: #{tpu_custom_call.1} parent=31 // pred_region
          %200 = dma.done %s193, 4096
        $region36: #{tpu_custom_call.1} parent=31 // pred_fallthru
          _
        // Predicated region
        $region37: #{tpu_custom_call.1} parent=31 // pred_check
          %p201 = pneg %p77
        $region38: #{tpu_custom_call.1} parent=31 // pred_check_branch
          %203 = sbr.rel (%p201) target = $region40
        $region39: #{tpu_custom_call.1} parent=31 // pred_region
          %204 = dma.done [#allocation6], 2048
        $region40: #{tpu_custom_call.1} parent=31 // pred_fallthru
          _
        %s205 = sand.u32 %s43, 1
        %s206 = scalar_lea.sflag [#allocation3], %s205
        %s207 = sand.u32 %s43, 1
        %s208 = smul.addr %s207, 256
        %s209 = scalar_lea.vmem [#allocation2], %s208
        %p210 = pneg %p56
        %p211 = pneg %p53
        %p212 = pneg %p77
        %p213 = pneg %p74
        %p214 = pneg %p98
        %p215 = pneg %p95
        %p216 = pneg %p126
        %p217 = pneg %p123
        %s218 = sand.u32 %s113, 1
        %s219 = scalar_lea.sflag [#allocation4], %s218
        %s220 = sand.u32 %s113, 1
        %s221 = smul.addr %s220, 256
        %s222 = scalar_lea.vmem [#allocation7], %s221
        %s223 = smul.u32 16, %s26
        %s224 = smul.u32 16, %s26
        %v225 = vld [vmem:[%s196] sm:$0xff]
        %v226 = vld [vmem:[%s196 + $0x8] sm:$0xff]
        %v227 = vld [vmem:[%s196 + $0x10] sm:$0xff]
        %v228 = vld [vmem:[%s196 + $0x18] sm:$0xff]
        %v229 = vld [vmem:[%s196 + $0x20] sm:$0xff]
        %v230 = vld [vmem:[%s196 + $0x28] sm:$0xff]
        %v231 = vld [vmem:[%s196 + $0x30] sm:$0xff]
        %v232 = vld [vmem:[%s196 + $0x38] sm:$0xff]
        %v233 = vld [vmem:[%s196 + $0x40] sm:$0xff]
        %v234 = vld [vmem:[%s196 + $0x48] sm:$0xff]
        %v235 = vld [vmem:[%s196 + $0x50] sm:$0xff]
        %v236 = vld [vmem:[%s196 + $0x58] sm:$0xff]
        %v237 = vld [vmem:[%s196 + $0x60] sm:$0xff]
        %v238 = vld [vmem:[%s196 + $0x68] sm:$0xff]
        %v239 = vld [vmem:[%s196 + $0x70] sm:$0xff]
        %v240 = vld [vmem:[%s196 + $0x78] sm:$0xff]
        %v241 = vld [vmem:[%s196 + $0x80] sm:$0xff]
        %v242 = vld [vmem:[%s196 + $0x88] sm:$0xff]
        %v243 = vld [vmem:[%s196 + $0x90] sm:$0xff]
        %v244 = vld [vmem:[%s196 + $0x98] sm:$0xff]
        %v245 = vld [vmem:[%s196 + $0xa0] sm:$0xff]
        %v246 = vld [vmem:[%s196 + $0xa8] sm:$0xff]
        %v247 = vld [vmem:[%s196 + $0xb0] sm:$0xff]
        %v248 = vld [vmem:[%s196 + $0xb8] sm:$0xff]
        %v249 = vld [vmem:[%s196 + $0xc0] sm:$0xff]
        %v250 = vld [vmem:[%s196 + $0xc8] sm:$0xff]
        %v251 = vld [vmem:[%s196 + $0xd0] sm:$0xff]
        %v252 = vld [vmem:[%s196 + $0xd8] sm:$0xff]
        %v253 = vld [vmem:[%s196 + $0xe0] sm:$0xff]
        %v254 = vld [vmem:[%s196 + $0xe8] sm:$0xff]
        %v255 = vld [vmem:[%s196 + $0xf0] sm:$0xff]
        %v256 = vld [vmem:[%s196 + $0xf8] sm:$0xff]
        %v257 = vld [vmem:[#allocation5] sm:$0xff]
        %v258 = vld [vmem:[#allocation5 + $0x8] sm:$0xff]
        %v259 = vld [vmem:[#allocation5 + $0x10] sm:$0xff]
        %v260 = vld [vmem:[#allocation5 + $0x18] sm:$0xff]
        %v261 = vld [vmem:[#allocation5 + $0x20] sm:$0xff]
        %v262 = vld [vmem:[#allocation5 + $0x28] sm:$0xff]
        %v263 = vld [vmem:[#allocation5 + $0x30] sm:$0xff]
        %v264 = vld [vmem:[#allocation5 + $0x38] sm:$0xff]
        %v265 = vld [vmem:[#allocation5 + $0x40] sm:$0xff]
        %v266 = vld [vmem:[#allocation5 + $0x48] sm:$0xff]
        %v267 = vld [vmem:[#allocation5 + $0x50] sm:$0xff]
        %v268 = vld [vmem:[#allocation5 + $0x58] sm:$0xff]
        %v269 = vld [vmem:[#allocation5 + $0x60] sm:$0xff]
        %v270 = vld [vmem:[#allocation5 + $0x68] sm:$0xff]
        %v271 = vld [vmem:[#allocation5 + $0x70] sm:$0xff]
        %v272 = vld [vmem:[#allocation5 + $0x78] sm:$0xff]
        %v273 = vld [vmem:[%s2] sm:$0x1]
        %v275 = vlaneseq
        %v276 = vshrl.u32 %v275, 7
        %v277 = vsub.s32 0, %v276
        %v278 = vrot.slane %v273, %v277
        %280 = vmatprep.subr.mxu0 0.0
        %281 = vmatpush1.msra.mxu0 %v272
        %282 = vmatprep.subr.mxu0 0.0
        %283 = vmatpush1.msra.mxu0 %v271
        %284 = vmatprep.subr.mxu0 0.0
        %285 = vmatpush1.msra.mxu0 %v270
        %286 = vmatprep.subr.mxu0 0.0
        %287 = vmatpush1.msra.mxu0 %v269
        %288 = vmatprep.subr.mxu0 0.0
        %289 = vmatpush1.msra.mxu0 %v268
        %290 = vmatprep.subr.mxu0 0.0
        %291 = vmatpush1.msra.mxu0 %v267
        %292 = vmatprep.subr.mxu0 0.0
        %293 = vmatpush1.msra.mxu0 %v266
        %294 = vmatprep.subr.mxu0 0.0
        %295 = vmatpush1.msra.mxu0 %v265
        %296 = vmatprep.subr.mxu0 0.0
        %297 = vmatpush1.msra.mxu0 %v264
        %298 = vmatprep.subr.mxu0 0.0
        %299 = vmatpush1.msra.mxu0 %v263
        %300 = vmatprep.subr.mxu0 0.0
        %301 = vmatpush1.msra.mxu0 %v262
        %302 = vmatprep.subr.mxu0 0.0
        %303 = vmatpush1.msra.mxu0 %v261
        %304 = vmatprep.subr.mxu0 0.0
        %305 = vmatpush1.msra.mxu0 %v260
        %306 = vmatprep.subr.mxu0 0.0
        %307 = vmatpush1.msra.mxu0 %v259
        %308 = vmatprep.subr.mxu0 0.0
        %309 = vmatpush1.msra.mxu0 %v258
        %310 = vmatprep.subr.mxu0 0.0
        %311 = vmatpush1.msra.mxu0 %v257
        %312 = vmatprep.subr.mxu0 0.0
        %313 = vmatpush2.msra.mxu0 0.0
        %314 = vmatprep.subr.mxu0 0.0
        %315 = vmatpush2.msra.mxu0 0.0
        %316 = vmatprep.subr.mxu0 0.0
        %317 = vmatpush2.msra.mxu0 0.0
        %318 = vmatprep.subr.mxu0 0.0
        %319 = vmatpush2.msra.mxu0 0.0
        %320 = vmatprep.subr.mxu0 0.0
        %321 = vmatpush2.msra.mxu0 0.0
        %322 = vmatprep.subr.mxu0 0.0
        %323 = vmatpush2.msra.mxu0 0.0
        %324 = vmatprep.subr.mxu0 0.0
        %325 = vmatpush2.msra.mxu0 0.0
        %326 = vmatprep.subr.mxu0 0.0
        %327 = vmatpush2.msra.mxu0 0.0
        %328 = vmatprep.subr.mxu0 0.0
        %329 = vmatpush2.msra.mxu0 0.0
        %330 = vmatprep.subr.mxu0 0.0
        %331 = vmatpush2.msra.mxu0 0.0
        %332 = vmatprep.subr.mxu0 0.0
        %333 = vmatpush2.msra.mxu0 0.0
        %334 = vmatprep.subr.mxu0 0.0
        %335 = vmatpush2.msra.mxu0 0.0
        %336 = vmatprep.subr.mxu0 0.0
        %337 = vmatpush2.msra.mxu0 0.0
        %338 = vmatprep.subr.mxu0 0.0
        %339 = vmatpush2.msra.mxu0 0.0
        %340 = vmatprep.subr.mxu0 0.0
        %341 = vmatpush2.msra.mxu0 0.0
        %342 = vmatprep.subr.mxu0 0.0
        %343 = vmatpush2.msra.mxu0 0.0
        %344 = vmatprep.mubr.f32.mxu0 0.0
        %345 = vmatmul.mubr.f32.gmra.mxu0 %v225
        %v346 = vpop.f32.mrf.mxu0
        %v347 = vadd.f32 %v278, %v346
        %v348 = vpop.f32.mrf.mxu0
        %349 = vmatprep.mubr.f32.mxu0 0.0
        %350 = vmatmul.mubr.f32.gmra.mxu0 %v226
        %v351 = vpop.f32.mrf.mxu0
        %v352 = vadd.f32 %v278, %v351
        %v353 = vpop.f32.mrf.mxu0
        %354 = vmatprep.mubr.f32.mxu0 0.0
        %355 = vmatmul.mubr.f32.gmra.mxu0 %v227
        %v356 = vpop.f32.mrf.mxu0
        %v357 = vadd.f32 %v278, %v356
        %v358 = vpop.f32.mrf.mxu0
        %359 = vmatprep.mubr.f32.mxu0 0.0
        %360 = vmatmul.mubr.f32.gmra.mxu0 %v228
        %v361 = vpop.f32.mrf.mxu0
        %v362 = vadd.f32 %v278, %v361
        %v363 = vpop.f32.mrf.mxu0
        %364 = vmatprep.mubr.f32.mxu0 0.0
        %365 = vmatmul.mubr.f32.gmra.mxu0 %v229
        %v366 = vpop.f32.mrf.mxu0
        %v367 = vadd.f32 %v278, %v366
        %v368 = vpop.f32.mrf.mxu0
        %369 = vmatprep.mubr.f32.mxu0 0.0
        %370 = vmatmul.mubr.f32.gmra.mxu0 %v230
        %v371 = vpop.f32.mrf.mxu0
        %v372 = vadd.f32 %v278, %v371
        %v373 = vpop.f32.mrf.mxu0
        %374 = vmatprep.mubr.f32.mxu0 0.0
        %375 = vmatmul.mubr.f32.gmra.mxu0 %v231
        %v376 = vpop.f32.mrf.mxu0
        %v377 = vadd.f32 %v278, %v376
        %v378 = vpop.f32.mrf.mxu0
        %379 = vmatprep.mubr.f32.mxu0 0.0
        %380 = vmatmul.mubr.f32.gmra.mxu0 %v232
        %v381 = vpop.f32.mrf.mxu0
        %v382 = vadd.f32 %v278, %v381
        %v383 = vpop.f32.mrf.mxu0
        %384 = vmatprep.mubr.f32.mxu0 0.0
        %385 = vmatmul.mubr.f32.gmra.mxu0 %v233
        %v386 = vpop.f32.mrf.mxu0
        %v387 = vadd.f32 %v278, %v386
        %v388 = vpop.f32.mrf.mxu0
        %389 = vmatprep.mubr.f32.mxu0 0.0
        %390 = vmatmul.mubr.f32.gmra.mxu0 %v234
        %v391 = vpop.f32.mrf.mxu0
        %v392 = vadd.f32 %v278, %v391
        %v393 = vpop.f32.mrf.mxu0
        %394 = vmatprep.mubr.f32.mxu0 0.0
        %395 = vmatmul.mubr.f32.gmra.mxu0 %v235
        %v396 = vpop.f32.mrf.mxu0
        %v397 = vadd.f32 %v278, %v396
        %v398 = vpop.f32.mrf.mxu0
        %399 = vmatprep.mubr.f32.mxu0 0.0
        %400 = vmatmul.mubr.f32.gmra.mxu0 %v236
        %v401 = vpop.f32.mrf.mxu0
        %v402 = vadd.f32 %v278, %v401
        %v403 = vpop.f32.mrf.mxu0
        %404 = vmatprep.mubr.f32.mxu0 0.0
        %405 = vmatmul.mubr.f32.gmra.mxu0 %v237
        %v406 = vpop.f32.mrf.mxu0
        %v407 = vadd.f32 %v278, %v406
        %v408 = vpop.f32.mrf.mxu0
        %409 = vmatprep.mubr.f32.mxu0 0.0
        %410 = vmatmul.mubr.f32.gmra.mxu0 %v238
        %v411 = vpop.f32.mrf.mxu0
        %v412 = vadd.f32 %v278, %v411
        %v413 = vpop.f32.mrf.mxu0
        %414 = vmatprep.mubr.f32.mxu0 0.0
        %415 = vmatmul.mubr.f32.gmra.mxu0 %v239
        %v416 = vpop.f32.mrf.mxu0
        %v417 = vadd.f32 %v278, %v416
        %v418 = vpop.f32.mrf.mxu0
        %419 = vmatprep.mubr.f32.mxu0 0.0
        %420 = vmatmul.mubr.f32.gmra.mxu0 %v240
        %v421 = vpop.f32.mrf.mxu0
        %v422 = vadd.f32 %v278, %v421
        %v423 = vpop.f32.mrf.mxu0
        %424 = vmatprep.mubr.f32.mxu0 0.0
        %425 = vmatmul.mubr.f32.gmra.mxu0 %v241
        %v426 = vpop.f32.mrf.mxu0
        %v427 = vadd.f32 %v278, %v426
        %v428 = vpop.f32.mrf.mxu0
        %429 = vmatprep.mubr.f32.mxu0 0.0
        %430 = vmatmul.mubr.f32.gmra.mxu0 %v242
        %v431 = vpop.f32.mrf.mxu0
        %v432 = vadd.f32 %v278, %v431
        %v433 = vpop.f32.mrf.mxu0
        %434 = vmatprep.mubr.f32.mxu0 0.0
        %435 = vmatmul.mubr.f32.gmra.mxu0 %v243
        %v436 = vpop.f32.mrf.mxu0
        %v437 = vadd.f32 %v278, %v436
        %v438 = vpop.f32.mrf.mxu0
        %439 = vmatprep.mubr.f32.mxu0 0.0
        %440 = vmatmul.mubr.f32.gmra.mxu0 %v244
        %v441 = vpop.f32.mrf.mxu0
        %v442 = vadd.f32 %v278, %v441
        %v443 = vpop.f32.mrf.mxu0
        %444 = vmatprep.mubr.f32.mxu0 0.0
        %445 = vmatmul.mubr.f32.gmra.mxu0 %v245
        %v446 = vpop.f32.mrf.mxu0
        %v447 = vadd.f32 %v278, %v446
        %v448 = vpop.f32.mrf.mxu0
        %449 = vmatprep.mubr.f32.mxu0 0.0
        %450 = vmatmul.mubr.f32.gmra.mxu0 %v246
        %v451 = vpop.f32.mrf.mxu0
        %v452 = vadd.f32 %v278, %v451
        %v453 = vpop.f32.mrf.mxu0
        %454 = vmatprep.mubr.f32.mxu0 0.0
        %455 = vmatmul.mubr.f32.gmra.mxu0 %v247
        %v456 = vpop.f32.mrf.mxu0
        %v457 = vadd.f32 %v278, %v456
        %v458 = vpop.f32.mrf.mxu0
        %459 = vmatprep.mubr.f32.mxu0 0.0
        %460 = vmatmul.mubr.f32.gmra.mxu0 %v248
        %v461 = vpop.f32.mrf.mxu0
        %v462 = vadd.f32 %v278, %v461
        %v463 = vpop.f32.mrf.mxu0
        %464 = vmatprep.mubr.f32.mxu0 0.0
        %465 = vmatmul.mubr.f32.gmra.mxu0 %v249
        %v466 = vpop.f32.mrf.mxu0
        %v467 = vadd.f32 %v278, %v466
        %v468 = vpop.f32.mrf.mxu0
        %469 = vmatprep.mubr.f32.mxu0 0.0
        %470 = vmatmul.mubr.f32.gmra.mxu0 %v250
        %v471 = vpop.f32.mrf.mxu0
        %v472 = vadd.f32 %v278, %v471
        %v473 = vpop.f32.mrf.mxu0
        %474 = vmatprep.mubr.f32.mxu0 0.0
        %475 = vmatmul.mubr.f32.gmra.mxu0 %v251
        %v476 = vpop.f32.mrf.mxu0
        %v477 = vadd.f32 %v278, %v476
        %v478 = vpop.f32.mrf.mxu0
        %479 = vmatprep.mubr.f32.mxu0 0.0
        %480 = vmatmul.mubr.f32.gmra.mxu0 %v252
        %v481 = vpop.f32.mrf.mxu0
        %v482 = vadd.f32 %v278, %v481
        %v483 = vpop.f32.mrf.mxu0
        %484 = vmatprep.mubr.f32.mxu0 0.0
        %485 = vmatmul.mubr.f32.gmra.mxu0 %v253
        %v486 = vpop.f32.mrf.mxu0
        %v487 = vadd.f32 %v278, %v486
        %v488 = vpop.f32.mrf.mxu0
        %489 = vmatprep.mubr.f32.mxu0 0.0
        %490 = vmatmul.mubr.f32.gmra.mxu0 %v254
        %v491 = vpop.f32.mrf.mxu0
        %v492 = vadd.f32 %v278, %v491
        %v493 = vpop.f32.mrf.mxu0
        %494 = vmatprep.mubr.f32.mxu0 0.0
        %495 = vmatmul.mubr.f32.gmra.mxu0 %v255
        %v496 = vpop.f32.mrf.mxu0
        %v497 = vadd.f32 %v278, %v496
        %v498 = vpop.f32.mrf.mxu0
        %499 = vmatprep.mubr.f32.mxu0 0.0
        %500 = vmatmul.mubr.f32.gmra.mxu0 %v256
        %v501 = vpop.f32.mrf.mxu0
        %v502 = vadd.f32 %v278, %v501
        %v503 = vpop.f32.mrf.mxu0
        %504 = vdwg.mxu0
        %v505 = vxor.u32 %v347, 2147483648
        %v506 = vxor.u32 %v352, 2147483648
        %v507 = vxor.u32 %v357, 2147483648
        %v508 = vxor.u32 %v362, 2147483648
        %v509 = vxor.u32 %v367, 2147483648
        %v510 = vxor.u32 %v372, 2147483648
        %v511 = vxor.u32 %v377, 2147483648
        %v512 = vxor.u32 %v382, 2147483648
        %v513 = vxor.u32 %v387, 2147483648
        %v514 = vxor.u32 %v392, 2147483648
        %v515 = vxor.u32 %v397, 2147483648
        %v516 = vxor.u32 %v402, 2147483648
        %v517 = vxor.u32 %v407, 2147483648
        %v518 = vxor.u32 %v412, 2147483648
        %v519 = vxor.u32 %v417, 2147483648
        %v520 = vxor.u32 %v422, 2147483648
        %v521 = vxor.u32 %v427, 2147483648
        %v522 = vxor.u32 %v432, 2147483648
        %v523 = vxor.u32 %v437, 2147483648
        %v524 = vxor.u32 %v442, 2147483648
        %v525 = vxor.u32 %v447, 2147483648
        %v526 = vxor.u32 %v452, 2147483648
        %v527 = vxor.u32 %v457, 2147483648
        %v528 = vxor.u32 %v462, 2147483648
        %v529 = vxor.u32 %v467, 2147483648
        %v530 = vxor.u32 %v472, 2147483648
        %v531 = vxor.u32 %v477, 2147483648
        %v532 = vxor.u32 %v482, 2147483648
        %v533 = vxor.u32 %v487, 2147483648
        %v534 = vxor.u32 %v492, 2147483648
        %v535 = vxor.u32 %v497, 2147483648
        %v536 = vxor.u32 %v502, 2147483648
        %v537 = vmul.f32 %v505, 1.442695
        %v538 = vpow.pop %v537
        %v539 = vmul.f32 %v506, 1.442695
        %v540 = vpow.pop %v539
        %v541 = vmul.f32 %v507, 1.442695
        %v542 = vpow.pop %v541
        %v543 = vmul.f32 %v508, 1.442695
        %v544 = vpow.pop %v543
        %v545 = vmul.f32 %v509, 1.442695
        %v546 = vpow.pop %v545
        %v547 = vmul.f32 %v510, 1.442695
        %v548 = vpow.pop %v547
        %v549 = vmul.f32 %v511, 1.442695
        %v550 = vpow.pop %v549
        %v551 = vmul.f32 %v512, 1.442695
        %v552 = vpow.pop %v551
        %v553 = vmul.f32 %v513, 1.442695
        %v554 = vpow.pop %v553
        %v555 = vmul.f32 %v514, 1.442695
        %v556 = vpow.pop %v555
        %v557 = vmul.f32 %v515, 1.442695
        %v558 = vpow.pop %v557
        %v559 = vmul.f32 %v516, 1.442695
        %v560 = vpow.pop %v559
        %v561 = vmul.f32 %v517, 1.442695
        %v562 = vpow.pop %v561
        %v563 = vmul.f32 %v518, 1.442695
        %v564 = vpow.pop %v563
        %v565 = vmul.f32 %v519, 1.442695
        %v566 = vpow.pop %v565
        %v567 = vmul.f32 %v520, 1.442695
        %v568 = vpow.pop %v567
        %v569 = vmul.f32 %v521, 1.442695
        %v570 = vpow.pop %v569
        %v571 = vmul.f32 %v522, 1.442695
        %v572 = vpow.pop %v571
        %v573 = vmul.f32 %v523, 1.442695
        %v574 = vpow.pop %v573
        %v575 = vmul.f32 %v524, 1.442695
        %v576 = vpow.pop %v575
        %v577 = vmul.f32 %v525, 1.442695
        %v578 = vpow.pop %v577
        %v579 = vmul.f32 %v526, 1.442695
        %v580 = vpow.pop %v579
        %v581 = vmul.f32 %v527, 1.442695
        %v582 = vpow.pop %v581
        %v583 = vmul.f32 %v528, 1.442695
        %v584 = vpow.pop %v583
        %v585 = vmul.f32 %v529, 1.442695
        %v586 = vpow.pop %v585
        %v587 = vmul.f32 %v530, 1.442695
        %v588 = vpow.pop %v587
        %v589 = vmul.f32 %v531, 1.442695
        %v590 = vpow.pop %v589
        %v591 = vmul.f32 %v532, 1.442695
        %v592 = vpow.pop %v591
        %v593 = vmul.f32 %v533, 1.442695
        %v594 = vpow.pop %v593
        %v595 = vmul.f32 %v534, 1.442695
        %v596 = vpow.pop %v595
        %v597 = vmul.f32 %v535, 1.442695
        %v598 = vpow.pop %v597
        %v599 = vmul.f32 %v536, 1.442695
        %v600 = vpow.pop %v599
        %v601 = vadd.f32 %v538, 1.0
        %v602 = vadd.f32 %v540, 1.0
        %v603 = vadd.f32 %v542, 1.0
        %v604 = vadd.f32 %v544, 1.0
        %v605 = vadd.f32 %v546, 1.0
        %v606 = vadd.f32 %v548, 1.0
        %v607 = vadd.f32 %v550, 1.0
        %v608 = vadd.f32 %v552, 1.0
        %v609 = vadd.f32 %v554, 1.0
        %v610 = vadd.f32 %v556, 1.0
        %v611 = vadd.f32 %v558, 1.0
        %v612 = vadd.f32 %v560, 1.0
        %v613 = vadd.f32 %v562, 1.0
        %v614 = vadd.f32 %v564, 1.0
        %v615 = vadd.f32 %v566, 1.0
        %v616 = vadd.f32 %v568, 1.0
        %v617 = vadd.f32 %v570, 1.0
        %v618 = vadd.f32 %v572, 1.0
        %v619 = vadd.f32 %v574, 1.0
        %v620 = vadd.f32 %v576, 1.0
        %v621 = vadd.f32 %v578, 1.0
        %v622 = vadd.f32 %v580, 1.0
        %v623 = vadd.f32 %v582, 1.0
        %v624 = vadd.f32 %v584, 1.0
        %v625 = vadd.f32 %v586, 1.0
        %v626 = vadd.f32 %v588, 1.0
        %v627 = vadd.f32 %v590, 1.0
        %v628 = vadd.f32 %v592, 1.0
        %v629 = vadd.f32 %v594, 1.0
        %v630 = vadd.f32 %v596, 1.0
        %v631 = vadd.f32 %v598, 1.0
        %v632 = vadd.f32 %v600, 1.0
        %v633 = vrcp.pop %v601
        %v634 = vmul.f32 1.0, %v633
        %v635 = vrcp.pop %v602
        %v636 = vmul.f32 1.0, %v635
        %v637 = vrcp.pop %v603
        %v638 = vmul.f32 1.0, %v637
        %v639 = vrcp.pop %v604
        %v640 = vmul.f32 1.0, %v639
        %v641 = vrcp.pop %v605
        %v642 = vmul.f32 1.0, %v641
        %v643 = vrcp.pop %v606
        %v644 = vmul.f32 1.0, %v643
        %v645 = vrcp.pop %v607
        %v646 = vmul.f32 1.0, %v645
        %v647 = vrcp.pop %v608
        %v648 = vmul.f32 1.0, %v647
        %v649 = vrcp.pop %v609
        %v650 = vmul.f32 1.0, %v649
        %v651 = vrcp.pop %v610
        %v652 = vmul.f32 1.0, %v651
        %v653 = vrcp.pop %v611
        %v654 = vmul.f32 1.0, %v653
        %v655 = vrcp.pop %v612
        %v656 = vmul.f32 1.0, %v655
        %v657 = vrcp.pop %v613
        %v658 = vmul.f32 1.0, %v657
        %v659 = vrcp.pop %v614
        %v660 = vmul.f32 1.0, %v659
        %v661 = vrcp.pop %v615
        %v662 = vmul.f32 1.0, %v661
        %v663 = vrcp.pop %v616
        %v664 = vmul.f32 1.0, %v663
        %v665 = vrcp.pop %v617
        %v666 = vmul.f32 1.0, %v665
        %v667 = vrcp.pop %v618
        %v668 = vmul.f32 1.0, %v667
        %v669 = vrcp.pop %v619
        %v670 = vmul.f32 1.0, %v669
        %v671 = vrcp.pop %v620
        %v672 = vmul.f32 1.0, %v671
        %v673 = vrcp.pop %v621
        %v674 = vmul.f32 1.0, %v673
        %v675 = vrcp.pop %v622
        %v676 = vmul.f32 1.0, %v675
        %v677 = vrcp.pop %v623
        %v678 = vmul.f32 1.0, %v677
        %v679 = vrcp.pop %v624
        %v680 = vmul.f32 1.0, %v679
        %v681 = vrcp.pop %v625
        %v682 = vmul.f32 1.0, %v681
        %v683 = vrcp.pop %v626
        %v684 = vmul.f32 1.0, %v683
        %v685 = vrcp.pop %v627
        %v686 = vmul.f32 1.0, %v685
        %v687 = vrcp.pop %v628
        %v688 = vmul.f32 1.0, %v687
        %v689 = vrcp.pop %v629
        %v690 = vmul.f32 1.0, %v689
        %v691 = vrcp.pop %v630
        %v692 = vmul.f32 1.0, %v691
        %v693 = vrcp.pop %v631
        %v694 = vmul.f32 1.0, %v693
        %v695 = vrcp.pop %v632
        %v696 = vmul.f32 1.0, %v695
        %v697 = vmul.f32 %v347, %v634
        %v698 = vmul.f32 %v352, %v636
        %v699 = vmul.f32 %v357, %v638
        %v700 = vmul.f32 %v362, %v640
        %v701 = vmul.f32 %v367, %v642
        %v702 = vmul.f32 %v372, %v644
        %v703 = vmul.f32 %v377, %v646
        %v704 = vmul.f32 %v382, %v648
        %v705 = vmul.f32 %v387, %v650
        %v706 = vmul.f32 %v392, %v652
        %v707 = vmul.f32 %v397, %v654
        %v708 = vmul.f32 %v402, %v656
        %v709 = vmul.f32 %v407, %v658
        %v710 = vmul.f32 %v412, %v660
        %v711 = vmul.f32 %v417, %v662
        %v712 = vmul.f32 %v422, %v664
        %v713 = vmul.f32 %v427, %v666
        %v714 = vmul.f32 %v432, %v668
        %v715 = vmul.f32 %v437, %v670
        %v716 = vmul.f32 %v442, %v672
        %v717 = vmul.f32 %v447, %v674
        %v718 = vmul.f32 %v452, %v676
        %v719 = vmul.f32 %v457, %v678
        %v720 = vmul.f32 %v462, %v680
        %v721 = vmul.f32 %v467, %v682
        %v722 = vmul.f32 %v472, %v684
        %v723 = vmul.f32 %v477, %v686
        %v724 = vmul.f32 %v482, %v688
        %v725 = vmul.f32 %v487, %v690
        %v726 = vmul.f32 %v492, %v692
        %v727 = vmul.f32 %v497, %v694
        %v728 = vmul.f32 %v502, %v696
        %729 = vst [vmem:[%s222] sm:$0xff] %v697
        %730 = vst [vmem:[%s222 + $0x8] sm:$0xff] %v698
        %731 = vst [vmem:[%s222 + $0x10] sm:$0xff] %v699
        %732 = vst [vmem:[%s222 + $0x18] sm:$0xff] %v700
        %733 = vst [vmem:[%s222 + $0x20] sm:$0xff] %v701
        %734 = vst [vmem:[%s222 + $0x28] sm:$0xff] %v702
        %735 = vst [vmem:[%s222 + $0x30] sm:$0xff] %v703
        %736 = vst [vmem:[%s222 + $0x38] sm:$0xff] %v704
        %737 = vst [vmem:[%s222 + $0x40] sm:$0xff] %v705
        %738 = vst [vmem:[%s222 + $0x48] sm:$0xff] %v706
        %739 = vst [vmem:[%s222 + $0x50] sm:$0xff] %v707
        %740 = vst [vmem:[%s222 + $0x58] sm:$0xff] %v708
        %741 = vst [vmem:[%s222 + $0x60] sm:$0xff] %v709
        %742 = vst [vmem:[%s222 + $0x68] sm:$0xff] %v710
        %743 = vst [vmem:[%s222 + $0x70] sm:$0xff] %v711
        %744 = vst [vmem:[%s222 + $0x78] sm:$0xff] %v712
        %745 = vst [vmem:[%s222 + $0x80] sm:$0xff] %v713
        %746 = vst [vmem:[%s222 + $0x88] sm:$0xff] %v714
        %747 = vst [vmem:[%s222 + $0x90] sm:$0xff] %v715
        %748 = vst [vmem:[%s222 + $0x98] sm:$0xff] %v716
        %749 = vst [vmem:[%s222 + $0xa0] sm:$0xff] %v717
        %750 = vst [vmem:[%s222 + $0xa8] sm:$0xff] %v718
        %751 = vst [vmem:[%s222 + $0xb0] sm:$0xff] %v719
        %752 = vst [vmem:[%s222 + $0xb8] sm:$0xff] %v720
        %753 = vst [vmem:[%s222 + $0xc0] sm:$0xff] %v721
        %754 = vst [vmem:[%s222 + $0xc8] sm:$0xff] %v722
        %755 = vst [vmem:[%s222 + $0xd0] sm:$0xff] %v723
        %756 = vst [vmem:[%s222 + $0xd8] sm:$0xff] %v724
        %757 = vst [vmem:[%s222 + $0xe0] sm:$0xff] %v725
        %758 = vst [vmem:[%s222 + $0xe8] sm:$0xff] %v726
        %759 = vst [vmem:[%s222 + $0xf0] sm:$0xff] %v727
        %760 = vst [vmem:[%s222 + $0xf8] sm:$0xff] %v728
        %s761 = sand.u32 %s113, 1
        %s762 = scalar_lea.sflag [#allocation4], %s761
        %s763 = sand.u32 %s113, 1
        %s764 = smul.addr %s763, 256
        %s765 = scalar_lea.vmem [#allocation7], %s764
        // Predicated region
        $region41: #{tpu_custom_call.1} parent=31 // pred_check
          %p766 = pneg %p123
        $region42: #{tpu_custom_call.1} parent=31 // pred_check_branch
          %768 = sbr.rel (%p766) target = $region44
        $region43: #{tpu_custom_call.1} parent=31 // pred_region
          %s769 = smul.u32 16, %s26
          %s771 = ssub.s32 4096, 4096
          %772 = vsyncadd %s762, %s771
          %s773 = smul.addr %s769, 2
          %s774 = smul.addr %s25, 32
          %s775 = sadd.s32 %s773, %s774
          %s776 = smul.addr %s775, 128
          %s777 = scalar_lea.hbm %s3, %s776
          %s778 = sshll.u32 %s765, 4
          %s779 = int_to_ptr.vmem [resolvable:$true] %s778
          %784 = dma.vmem_to_hbm [thread:$0]  %s779, 4096, %s777, %s762, 128, 128, 8
        $region44: #{tpu_custom_call.1} parent=31 // pred_fallthru
          _
      $region32: #{tpu_custom_call.1} parent=5 // pred_fallthru
        _
      %p785 = scmp.le.s32.totalorder 2, %s16
      // Predicated region
      $region45: #{tpu_custom_call.1} parent=5 // pred_check
        %p786 = pneg %p785
      $region46: #{tpu_custom_call.1} parent=5 // pred_check_branch
        %788 = sbr.rel (%p786) target = $region48
      $region47: #{tpu_custom_call.1} parent=5 // pred_region
        %s789 = ssub.s32 %s16, 2
        // Predicated region
        $region49: #{tpu_custom_call.1} parent=47 // pred_check
          %p790 = pneg %p129
        $region50: #{tpu_custom_call.1} parent=47 // pred_check_branch
          %792 = sbr.rel (%p790) target = $region52
        $region51: #{tpu_custom_call.1} parent=47 // pred_region
          %s793 = sand.u32 %s114, 1
          %s794 = scalar_lea.sflag [#allocation4], %s793
          %s795 = sand.u32 %s114, 1
          %s796 = smul.addr %s795, 256
          %s797 = scalar_lea.vmem [#allocation7], %s796
          %798 = dma.done %s794, 4096
        $region52: #{tpu_custom_call.1} parent=47 // pred_fallthru
          _
      $region48: #{tpu_custom_call.1} parent=5 // pred_fallthru
        _
    $region6: #{tpu_custom_call.1} parent=1 // loop_footer
      %s20 = sadd.s32 1, %s16
    $region7: #{tpu_custom_call.1} parent=1 // loop_footer_branch
      %15 = sbr.rel target = $region3
    $region8: #{tpu_custom_call.1} parent=1 // loop_exit
      _
    %799 = vsyncpa [#allocation3], 1
    %s800 = scalar_lea.sflag [#allocation3], 1
    %801 = vsyncpa %s800, 1
    %802 = vsyncpa [#allocation6], 1
    %803 = vsyncpa [#allocation4], 1
    %s804 = scalar_lea.sflag [#allocation4], 1
    %805 = vsyncpa %s804, 1

</llo_original>
